<compile_context>
chip_gen: v6e
topology: v6e:2x2x1
jax: 0.10.0
libtpu: 0.0.40
codegen_flags: <defaults>
</compile_context>

<pallas_src>
import functools

import jax
import jax.numpy as jnp
from jax import lax
from jax.experimental import pallas as pl
from jax.experimental.pallas import tpu as pltpu


def _round_up(x, m):
    return (x + m - 1) // m * m


def _vmem_capacity_bytes():
    try:
        return int(pltpu.get_tpu_info().vmem_capacity_bytes)
    except Exception:
        return 64 << 20  # conservative: v7x per-core physical VMEM


def _plan_pair_sum(M, F, itemsize, n_buf):
    """M-block size for the streaming reduction from a generation-aware VMEM budget
    that accounts for every resident buffer (with lane/sublane padding), plus the
    matching vmem_limit_bytes."""
    cap = _vmem_capacity_bytes()
    budget = min((cap * 5) // 8, 96 << 20)   # ~40 MiB on v7x (64), ~80 MiB on v5e/v6e (128)
    f_pad = _round_up(F, 128)                # lane padding of the last dim in VMEM
    resident = 8 * f_pad * 4                 # f32 accumulator scratch (<=8, F)
    resident += 2 * 8 * f_pad * 4            # double-buffered (1, F) f32 output block
    resident += 2 << 20                      # slack: semaphores / internal scratch
    avail = max(budget - resident, 0)
    bytes_per_row = f_pad * itemsize
    m_cap = max(1, avail // (n_buf * bytes_per_row))

    if M <= 8:
        m_blk = M
    else:
        m_blk = max(8, (int(m_cap) // 8) * 8)      # multiple of 8 -> sublane-dense chunks
        m_blk = min(m_blk, _round_up(M, 8))        # no point exceeding M (tail is masked)
    ch = min(8, m_blk)                             # sublane-dense accumulate chunk
    trips = m_blk // ch

    footprint = n_buf * m_blk * bytes_per_row + resident
    vmem_limit = min(cap - (8 << 20), max(footprint + (8 << 20), 32 << 20))
    return m_blk, ch, trips, int(vmem_limit)


def _pair_sum_kernel(p_ref, psum_ref, acc_ref, *, m_total, m_blk, ch, trips, unroll):
    # p_ref:    (m_blk, F)  one M-block of lane-dense pair features for batch b
    # psum_ref: (1, F) f32  sum over M for batch b (resident across the m grid axis)
    # acc_ref:  (ch, F) f32 running partial sums (sublane-dense)
    mb = pl.program_id(1)

    # NOTE: init and the accumulate below run in program order within the mb==0 step.
    @pl.when(mb == 0)
    def _():
        acc_ref[...] = jnp.zeros_like(acc_ref)

    # Rows of this block that actually exist in p (the last block may be a tail).
    valid = jnp.minimum(m_blk, m_total - mb * m_blk)
    row_ids = lax.broadcasted_iota(jnp.int32, (ch, acc_ref.shape[1]), 0)  # hoisted

    def body(i, carry):
        start = pl.multiple_of(i * ch, ch)
        chunk = p_ref[pl.ds(start, ch), :].astype(jnp.float32)
        chunk = jnp.where(row_ids < (valid - i * ch), chunk, 0.0)
        acc_ref[...] += chunk
        return carry

    lax.fori_loop(0, trips, body, 0, unroll=unroll)

    @pl.when(mb == pl.num_programs(1) - 1)
    def _():
        psum_ref[...] = acc_ref[...].sum(axis=0, keepdims=True)


def _pair_sum(p_flat, n_buf):
    """p_flat: [B, M, F] -> f32 [B, 1, F] = sum over M (pure HBM-streaming kernel)."""
    B, M, F = p_flat.shape
    itemsize = jnp.dtype(p_flat.dtype).itemsize
    m_blk, ch, trips, vmem_limit = _plan_pair_sum(M, F, itemsize, n_buf)
    unroll = max(1, min(8, trips))
    grid = (B, pl.cdiv(M, m_blk))

    p_block = (pl.Squeezed(), m_blk, F)
    p_index = lambda b, m: (b, m, 0)
    if n_buf == 2:
        p_spec = pl.BlockSpec(p_block, p_index)
    else:
        p_spec = pl.BlockSpec(p_block, p_index, pipeline_mode=pl.Buffered(n_buf))

    kernel = functools.partial(_pair_sum_kernel, m_total=M, m_blk=m_blk,
                               ch=ch, trips=trips, unroll=unroll)

    return pl.pallas_call(
        kernel,
        out_shape=jax.ShapeDtypeStruct((B, 1, F), jnp.float32),
        grid_spec=pltpu.PrefetchScalarGridSpec(
            num_scalar_prefetch=0,
            grid=grid,
            in_specs=[p_spec],
            out_specs=pl.BlockSpec((pl.Squeezed(), 1, F), lambda b, m: (b, 0, 0)),
            scratch_shapes=[pltpu.VMEM((ch, F), jnp.float32)],
        ),
        compiler_params=pltpu.CompilerParams(
            dimension_semantics=("parallel", "arbitrary"),
            vmem_limit_bytes=vmem_limit),
        cost_estimate=pl.CostEstimate(
            flops=int(B) * int(M) * int(F),
            transcendentals=0,
            bytes_accessed=int(B) * int(M) * int(F) * int(itemsize) + int(B) * int(F) * 4),
    )(p_flat)


def _epilogue_kernel(x_ref, w_ref, b_ref, o_ref):
    # x_ref: (N, 2K) f32 = [s[b] | sum_M p[b]];  w_ref: (2K, O);  b_ref: (1, O) f32
    out = jnp.dot(x_ref[...], w_ref[...].astype(jnp.float32),
                  preferred_element_type=jnp.float32)
    o_ref[...] = (out + b_ref[...]).astype(o_ref.dtype)


def combine_features(s, p, w_single, b_single, w_pair, b_pair):
    """s: [B, N, K]; p: [B, M, N, K]; w_*: [K, O] (pre-transposed nn.Linear weight);
    b_*: [1, O].  Returns single(s) + pair(p).sum(axis=-3): [B, N, O]."""
    B, N, K = s.shape
    _, M, _, _ = p.shape
    O = w_single.shape[1]
    F = N * K

    # --- Stage 1: lane-dense streaming reduction of p over M (HBM-bound). ---
    p_flat = p.reshape(B, M, F)
    try:
        psum = _pair_sum(p_flat, n_buf=3)
    except Exception:
        psum = _pair_sum(p_flat, n_buf=2)   # fallback if 3-deep pipelining is rejected
    psum = psum.reshape(B, N, K)

    # --- Wrapper layout plumbing (all tensors here are M-times smaller than p). ---
    x_cat = jnp.concatenate([s.astype(jnp.float32), psum], axis=-1)   # [B, N, 2K]
    w_cat = jnp.concatenate([w_single, w_pair], axis=0)               # [2K, O]
    b_eff = (b_single.astype(jnp.float32)
             + jnp.float32(M) * b_pair.astype(jnp.float32))           # [1, O]

    # --- Stage 2: one fused MXU matmul + folded bias per batch. ---
    x_bytes = B * N * 2 * K * 4
    w_bytes = 2 * K * O * jnp.dtype(w_single.dtype).itemsize
    o_bytes = B * N * O * jnp.dtype(s.dtype).itemsize
    return pl.pallas_call(
        _epilogue_kernel,
        out_shape=jax.ShapeDtypeStruct((B, N, O), s.dtype),
        grid_spec=pltpu.PrefetchScalarGridSpec(
            num_scalar_prefetch=0,
            grid=(B,),
            in_specs=[
                pl.BlockSpec((pl.Squeezed(), N, 2 * K), lambda b: (b, 0, 0)),
                pl.BlockSpec((2 * K, O), lambda b: (0, 0)),
                pl.BlockSpec((1, O), lambda b: (0, 0)),
            ],
            out_specs=pl.BlockSpec((pl.Squeezed(), N, O), lambda b: (b, 0, 0)),
        ),
        compiler_params=pltpu.CompilerParams(dimension_semantics=("parallel",)),
        cost_estimate=pl.CostEstimate(
            flops=2 * B * N * (2 * K) * O,
            transcendentals=0,
            bytes_accessed=int(x_bytes + w_bytes + o_bytes)),
    )(x_cat, w_cat, b_eff)


if __name__ == "__main__":
    # Small shapes consistent with PairDrift usage:
    #   s: [B, N, in_dim], p: [B, M, N, in_dim] (sum over dim=-3 == M axis)
    B, M, N, in_dim, out_dim = 2, 8, 8, 16, 32

    key = jax.random.PRNGKey(0)
    k_s, k_p, k_ws, k_bs, k_wp, k_bp = jax.random.split(key, 6)

    s = jax.random.normal(k_s, (B, N, in_dim), dtype=jnp.float32)
    p = jax.random.normal(k_p, (B, M, N, in_dim), dtype=jnp.float32)

    # nn.Linear(in_dim, out_dim): weight [out_dim, in_dim], bias [out_dim].
    # Stored pre-transposed as [in_dim, out_dim] for the kernel.
    w_single = jax.random.normal(k_ws, (in_dim, out_dim), dtype=jnp.float32) * 0.1
    b_single = jax.random.normal(k_bs, (1, out_dim), dtype=jnp.float32) * 0.1
    w_pair = jax.random.normal(k_wp, (in_dim, out_dim), dtype=jnp.float32) * 0.1
    b_pair = jax.random.normal(k_bp, (1, out_dim), dtype=jnp.float32) * 0.1

    out = combine_features(s, p, w_single, b_single, w_pair, b_pair)
    out = jax.block_until_ready(out)

    # Pure-JAX reference of the PyTorch forward
    ref = (jnp.einsum("bni,io->bno", s, w_single) + b_single[0]
           + (jnp.einsum("bmni,io->bmno", p, w_pair) + b_pair[0]).sum(axis=-3))

    assert out.shape == (B, N, out_dim)
    assert jnp.allclose(out, ref, atol=1e-4, rtol=1e-4), "mismatch vs reference"
    print("KERNEL_OK")
</pallas_src>

<mosaic_0001>
module attributes {stable_mosaic.version = 11 : i64} {
  func.func @_pair_sum_kernel(%arg0: i32, %arg1: i32, %arg2: memref<1x8x128xf32, #tpu.memory_space<vmem>>, %arg3: memref<1x1x128xf32, #tpu.memory_space<vmem>>, %arg4: memref<8x128xf32, #tpu.memory_space<vmem>>) attributes {dimension_semantics = [#tpu.dimension_semantics<parallel>, #tpu.dimension_semantics<arbitrary>], iteration_bounds = array<i64: 2, 1>, scalar_prefetch = 0 : i64, scratch_operands = 1 : i64, tpu.core_type = #tpu.core_type<tc>, window_params = [{transform_indices = @transform_0, window_bounds = array<i64: 1, 8, 128>}, {transform_indices = @transform_1, window_bounds = array<i64: 1, 1, 128>}]} {
    %c0_i32 = arith.constant 0 : i32
    %0 = arith.cmpi eq, %arg1, %c0_i32 : i32
    %1 = arith.extui %0 : i1 to i32
    %c0_i32_0 = arith.constant 0 : i32
    %2 = arith.cmpi ne, %1, %c0_i32_0 : i32
    scf.if %2 {
      %cst_13 = arith.constant 0.000000e+00 : f32
      %24 = vector.broadcast %cst_13 : f32 to vector<8x128xf32>
      %c0_14 = arith.constant 0 : index
      %c0_15 = arith.constant 0 : index
      %25 = vector.load %arg4[%c0_14, %c0_15] : memref<8x128xf32, #tpu.memory_space<vmem>>, vector<8x128xf32>
      tpu.vector_store %arg4[%c0_14, %c0_15], %24 {strides = array<i32>} : memref<8x128xf32, #tpu.memory_space<vmem>>, vector<8x128xf32>,
    } else {
    }
    %c8_i32 = arith.constant 8 : i32
    %3 = arith.muli %arg1, %c8_i32 : i32
    %c8_i32_1 = arith.constant 8 : i32
    %4 = arith.subi %c8_i32_1, %3 : i32
    %c8_i32_2 = arith.constant 8 : i32
    %5 = arith.minsi %c8_i32_2, %4 : i32
    %6 = tpu.iota {dimensions = array<i32: 0>} : vector<8x128xi32>
    %c0_i32_3 = arith.constant 0 : i32
    %c8_i32_4 = arith.constant 8 : i32
    %7 = arith.muli %c0_i32_3, %c8_i32_4 : i32
    %8 = tpu.assume_multiple %7, 8 : i32
    %c0 = arith.constant 0 : index
    %9 = arith.index_cast %8 : i32 to index
    %c0_5 = arith.constant 0 : index
    %10 = vector.load %arg2[%c0, %9, %c0_5] : memref<1x8x128xf32, #tpu.memory_space<vmem>>, vector<1x8x128xf32>
    %11 = vector.shape_cast %10 : vector<1x8x128xf32> to vector<8x128xf32>
    %c8_i32_6 = arith.constant 8 : i32
    %12 = arith.muli %c0_i32_3, %c8_i32_6 : i32
    %13 = arith.subi %5, %12 : i32
    %14 = vector.broadcast %13 : i32 to vector<8x128xi32>
    %15 = arith.cmpi slt, %6, %14 : vector<8x128xi32>
    %cst = arith.constant 0.000000e+00 : f32
    %16 = vector.broadcast %cst : f32 to vector<8x128xf32>
    %17 = arith.select %15, %11, %16 : vector<8x128xi1>, vector<8x128xf32>
    %c0_7 = arith.constant 0 : index
    %c0_8 = arith.constant 0 : index
    %18 = vector.load %arg4[%c0_7, %c0_8] : memref<8x128xf32, #tpu.memory_space<vmem>>, vector<8x128xf32>
    %19 = arith.addf %18, %17 : vector<8x128xf32>
    %c0_9 = arith.constant 0 : index
    %c0_10 = arith.constant 0 : index
    %20 = vector.load %arg4[%c0_9, %c0_10] : memref<8x128xf32, #tpu.memory_space<vmem>>, vector<8x128xf32>
    tpu.vector_store %arg4[%c0_9, %c0_10], %19 {strides = array<i32>} : memref<8x128xf32, #tpu.memory_space<vmem>>, vector<8x128xf32>,
    %c1_i32 = arith.constant 1 : i32
    %c0_i32_11 = arith.constant 0 : i32
    %21 = arith.cmpi eq, %arg1, %c0_i32_11 : i32
    %22 = arith.extui %21 : i1 to i32
    %c0_i32_12 = arith.constant 0 : i32
    %23 = arith.cmpi ne, %22, %c0_i32_12 : i32
    scf.if %23 {
      %c0_13 = arith.constant 0 : index
      %c0_14 = arith.constant 0 : index
      %24 = vector.load %arg4[%c0_13, %c0_14] : memref<8x128xf32, #tpu.memory_space<vmem>>, vector<8x128xf32>
      %cst_15 = arith.constant dense<0.000000e+00> : vector<128xf32>
      %25 = vector.multi_reduction <add>, %24, %cst_15 [0] : vector<8x128xf32> to vector<128xf32>
      %26 = vector.shape_cast %25 : vector<128xf32> to vector<1x128xf32>
      %c0_16 = arith.constant 0 : index
      %c0_17 = arith.constant 0 : index
      %c0_18 = arith.constant 0 : index
      %27 = vector.load %arg3[%c0_16, %c0_17, %c0_18] : memref<1x1x128xf32, #tpu.memory_space<vmem>>, vector<1x1x128xf32>
      %28 = vector.shape_cast %27 : vector<1x1x128xf32> to vector<1x128xf32>
      %29 = vector.shape_cast %26 : vector<1x128xf32> to vector<1x1x128xf32>
      tpu.vector_store %arg3[%c0_16, %c0_17, %c0_18], %29 {strides = array<i32>} : memref<1x1x128xf32, #tpu.memory_space<vmem>>, vector<1x1x128xf32>,
    } else {
    }
    return
  }
  func.func @transform_0(%arg0: i32, %arg1: i32) -> (i32, i32, i32) {
    %c0_i32 = arith.constant 0 : i32
    %c0_i32_0 = arith.constant 0 : i32
    return %arg0, %arg1, %c0_i32 : i32, i32, i32
  }
  func.func @transform_1(%arg0: i32, %arg1: i32) -> (i32, i32, i32) {
    %c0_i32 = arith.constant 0 : i32
    %c0_i32_0 = arith.constant 0 : i32
    %c0_i32_1 = arith.constant 0 : i32
    return %arg0, %c0_i32, %c0_i32_0 : i32, i32, i32
  }
}

</mosaic_0001>

<llo_original>
// kernel: tpu_custom_call.1
$region0: #{tpu_custom_call.1}
  #allocation0 [shape = 'u32[]', space=smem, size = 0x4, offset = 0x4, fixed_abs, tag = 'smem constant byte address 0x4 - core index']
  #allocation1 [shape = 'u32[144,128]{1,0:T(1,128)}', space=vmem, size = 0x12000, scoped, tag = 'internal scratch']
  #allocation2 [shape = 'f32[8,128]{1,0:T(8,128)}', space=vmem, size = 0x1000, scoped, tag = 'scratch operand']
  %s0 = inlined_call_operand.hbm [shape: f32[2,8,128], index: 0, kind: input, shape index: {}]
  %s1 = inlined_call_operand.hbm [shape: f32[2,1,128], index: 1, kind: output, shape index: {}]
  %s2 = sld [smem:[#allocation0]]
  $region49: #{tpu_custom_call.1} parent=0
    _
  %s4 = ssub.s32 1, %s2
  %s5 = scalar_select 0, %s4, %s2
  $region1: #{tpu_custom_call.1} parent=0
    #allocation3 [shape = 'u8[8192]{0}', space=vmem, size = 0x2000, scoped, tag = 'input window, operand 0']
    #allocation4 [shape = 's32[2]{0}', space=sflag, size = 0x8, scoped, tag = 'scoped memory for tpu_custom_call.1']
    #allocation5 [shape = 's32[2]{0}', space=sflag, size = 0x8, scoped, tag = 'scoped memory for tpu_custom_call.1']
    #allocation6 [shape = 'u8[1024]{0}', space=vmem, size = 0x400, scoped, tag = 'output window, operand 0']
    %6 = vsyncpa [#allocation4], 0
    %s7 = scalar_lea.sflag [#allocation4], 1
    %8 = vsyncpa %s7, 0
    %9 = vsyncpa [#allocation5], 0
    %s10 = scalar_lea.sflag [#allocation5], 1
    %11 = vsyncpa %s10, 0
    loop: start=0, step=1, limit=4
    $region2: #{tpu_custom_call.1} parent=1 // loop_pre_header
      _
    $region3: #{tpu_custom_call.1} parent=1 // loop_header
      %s13 = sphi 0, %s17
      %p14 = scmp.ge.s32.totalorder %s13, 4
      %s20 = sphi 0, %s32
      %s21 = sphi 0, %s28
      %s22 = sphi 0, %s20
      %s23 = sphi 0, %s21
      %s24 = sphi 0, %s22
      %s25 = sphi 0, %s23
      %s37 = sphi 0, %s39
      %s40 = sphi 0, %s37
      %s41 = sphi 0, %s40
      %s57 = sphi 0, %s41
      %s63 = sphi 0, %s65
      %s66 = sphi 0, %s63
      %s67 = sphi 0, %s66
      %s83 = sphi 0, %s67
    $region4: #{tpu_custom_call.1} parent=1 // loop_header_branch
      %16 = sbr.rel (%p14) target = $region8
    $region5: #{tpu_custom_call.1} parent=1 // loop_body
      %s18 = ssub.s32 %s13, 1
      %s19 = ssub.s32 %s13, 2
      %s26 = sadd.s32 1, %s21
      %p27 = scmp.ge.s32.totalorder %s26, 1
      %s28 = scalar_select %p27, 0, %s26
      %s29 = sadd.s32 1, %s20
      %s30 = scalar_select %p27, %s29, %s20
      %p31 = scmp.ge.s32.totalorder %s30, 2
      %s32 = scalar_select %p31, 0, %s30
      %s33 = ssub.s32 %s20, %s32
      %s34 = ssub.s32 %s21, %s28
      %s35 = sor.u32 %s33, %s34
      %p36 = scmp.eq.s32.totalorder %s35, 0
      %s38 = sadd.s32 %s37, 1
      %s39 = scalar_select %p36, %s37, %s38
      %p42 = pneg %p36
      %p43 = scmp.eq.s32.totalorder %s13, 1
      %p44 = por %p42, %p43
      %p45 = scmp.ne.s32.totalorder %s37, %s40
      %p46 = scmp.eq.s32.totalorder %s13, 0
      %p47 = por %p45, %p46
      %p48 = scmp.ne.s32.totalorder %s37, %s40
      %p49 = scmp.eq.s32.totalorder %s18, 1
      %p50 = por %p48, %p49
      %p51 = scmp.ne.s32.totalorder %s40, %s41
      %p52 = scmp.eq.s32.totalorder %s18, 0
      %p53 = por %p51, %p52
      %p54 = scmp.ne.s32.totalorder %s40, %s41
      %p55 = scmp.eq.s32.totalorder %s19, 1
      %p56 = por %p54, %p55
      %p58 = scmp.ne.s32.totalorder %s41, %s57
      %p59 = scmp.eq.s32.totalorder %s19, 0
      %p60 = por %p58, %p59
      %s61 = ssub.s32 %s20, %s32
      %p62 = scmp.eq.s32.totalorder %s61, 0
      %s64 = sadd.s32 %s63, 1
      %s65 = scalar_select %p62, %s63, %s64
      %p68 = pneg %p62
      %p69 = scmp.eq.s32.totalorder %s13, 1
      %p70 = por %p68, %p69
      %p71 = scmp.ne.s32.totalorder %s63, %s66
      %p72 = scmp.eq.s32.totalorder %s13, 0
      %p73 = por %p71, %p72
      %p74 = scmp.ne.s32.totalorder %s63, %s66
      %p75 = scmp.eq.s32.totalorder %s18, 1
      %p76 = por %p74, %p75
      %p77 = scmp.ne.s32.totalorder %s66, %s67
      %p78 = scmp.eq.s32.totalorder %s18, 0
      %p79 = por %p77, %p78
      %p80 = scmp.ne.s32.totalorder %s66, %s67
      %p81 = scmp.eq.s32.totalorder %s19, 1
      %p82 = por %p80, %p81
      %p84 = scmp.ne.s32.totalorder %s67, %s83
      %p85 = scmp.eq.s32.totalorder %s19, 0
      %p86 = por %p84, %p85
      %p87 = scmp.le.s32.totalorder 1, %s13
      %p88 = scmp.lt.s32.totalorder %s13, 3
      %p89 = pnand %p87, %p88
      %p90 = pneg %p89
      // Predicated region
      $region9: #{tpu_custom_call.1} parent=5 // pred_check
        _
      $region10: #{tpu_custom_call.1} parent=5 // pred_check_branch
        %92 = sbr.rel (%p89) target = $region12
      $region11: #{tpu_custom_call.1} parent=5 // pred_region
        %s93 = ssub.s32 %s13, 1
      $region12: #{tpu_custom_call.1} parent=5 // pred_fallthru
        _
      %p94 = scmp.lt.s32.totalorder %s13, 2
      // Predicated region
      $region13: #{tpu_custom_call.1} parent=5 // pred_check
        %p95 = pneg %p94
      $region14: #{tpu_custom_call.1} parent=5 // pred_check_branch
        %97 = sbr.rel (%p95) target = $region16
      $region15: #{tpu_custom_call.1} parent=5 // pred_region
        // Predicated region
        $region17: #{tpu_custom_call.1} parent=15 // pred_check
          %p98 = pneg %p47
        $region18: #{tpu_custom_call.1} parent=15 // pred_check_branch
          %100 = sbr.rel (%p98) target = $region20
        $region19: #{tpu_custom_call.1} parent=15 // pred_region
          %s101 = sand.u32 %s37, 1
          %s102 = scalar_lea.sflag [#allocation4], %s101
          %s103 = sand.u32 %s37, 1
          %s104 = smul.addr %s103, 8
          %s105 = scalar_lea.vmem [#allocation3], %s104
          %s107 = ssub.s32 128, 128
          %108 = vsyncadd %s102, %s107
          %s109 = sadd.s32 %s21, %s20
          %s110 = smul.addr %s109, 128
          %s111 = scalar_lea.hbm %s0, %s110
          %s113 = sshll.u32 %s105, 4
          %s114 = int_to_ptr.vmem [resolvable:$true] %s113
          %116 = dma.hbm_to_vmem [thread:$0]  %s111, 128, %s114, %s102
        $region20: #{tpu_custom_call.1} parent=15 // pred_fallthru
          _
      $region16: #{tpu_custom_call.1} parent=5 // pred_fallthru
        _
      %p117 = scmp.le.s32.totalorder 1, %s13
      %p118 = scmp.lt.s32.totalorder %s13, 3
      %p119 = pnand %p117, %p118
      %p120 = pneg %p119
      // Predicated region
      $region21: #{tpu_custom_call.1} parent=5 // pred_check
        _
      $region22: #{tpu_custom_call.1} parent=5 // pred_check_branch
        %122 = sbr.rel (%p119) target = $region24
      $region23: #{tpu_custom_call.1} parent=5 // pred_region
        %s123 = ssub.s32 %s13, 1
        %s124 = sand.u32 %s40, 1
        %s125 = scalar_lea.sflag [#allocation4], %s124
        %s126 = sand.u32 %s40, 1
        %s127 = smul.addr %s126, 8
        %s128 = scalar_lea.vmem [#allocation3], %s127
        // Predicated region
        $region25: #{tpu_custom_call.1} parent=23 // pred_check
          %p129 = pneg %p53
        $region26: #{tpu_custom_call.1} parent=23 // pred_check_branch
          %131 = sbr.rel (%p129) target = $region28
        $region27: #{tpu_custom_call.1} parent=23 // pred_region
          %132 = dma.done %s125, 128
        $region28: #{tpu_custom_call.1} parent=23 // pred_fallthru
          _
        %s133 = sand.u32 %s40, 1
        %s134 = scalar_lea.sflag [#allocation4], %s133
        %s135 = sand.u32 %s40, 1
        %s136 = smul.addr %s135, 8
        %s137 = scalar_lea.vmem [#allocation3], %s136
        %p138 = pneg %p53
        %p139 = pneg %p50
        %p140 = pneg %p79
        %p141 = pneg %p76
        %s142 = sand.u32 %s66, 1
        %s143 = scalar_lea.sflag [#allocation5], %s142
        %s144 = sand.u32 %s66, 1
        %s145 = scalar_lea.vmem [#allocation6], %s144
        %p146 = scmp.eq.s32.totalorder %s23, 0
        // Predicated region
        $region29: #{tpu_custom_call.1} parent=23 // pred_check
          %p147 = pneg %p146
        $region30: #{tpu_custom_call.1} parent=23 // pred_check_branch
          %149 = sbr.rel (%p147) target = $region32
        $region31: #{tpu_custom_call.1} parent=23 // pred_region
          %150 = vst [vmem:[#allocation2] sm:$0xff] 0.0
        $region32: #{tpu_custom_call.1} parent=23 // pred_fallthru
          _
        %s151 = smul.u32 %s23, 8
        %s152 = ssub.s32 8, %s151
        %p153 = scmp.lt.s32.totalorder %s152, 8
        %s154 = scalar_select %p153, %s152, 8
        %v155 = vlaneseq
        %v156 = vshrl.u32 %v155, 7
        %v157 = vld [vmem:[%s128] sm:$0xff]
        %v158 = vstv %s154
        %vm159 = vcmp.lt.s32.totalorder %v156, %v158
        %v160 = vsel %vm159, %v157, 0.0
        %v161 = vld [vmem:[#allocation2] sm:$0xff]
        %v162 = vadd.f32 %v161, %v160
        %163 = vst [vmem:[#allocation2] sm:$0xff] %v162
        // Predicated region
        $region33: #{tpu_custom_call.1} parent=23 // pred_check
          %p164 = pneg %p146
        $region34: #{tpu_custom_call.1} parent=23 // pred_check_branch
          %166 = sbr.rel (%p164) target = $region36
        $region35: #{tpu_custom_call.1} parent=23 // pred_region
          %v167 = vld [vmem:[#allocation2] sm:$0xff]
          %v168 = vrot.slane %v167, 4
          %v169 = vadd.f32 %v167, %v168
          %v170 = vrot.slane %v169, 2
          %v171 = vadd.f32 %v169, %v170
          %v172 = vrot.slane %v171, 1
          %v173 = vadd.f32 %v171, %v172
          %174 = vst [vmem:[%s145] sm:$0x1] %v173
        $region36: #{tpu_custom_call.1} parent=23 // pred_fallthru
          _
        %s175 = sand.u32 %s66, 1
        %s176 = scalar_lea.sflag [#allocation5], %s175
        %s177 = sand.u32 %s66, 1
        %s178 = scalar_lea.vmem [#allocation6], %s177
        // Predicated region
        $region37: #{tpu_custom_call.1} parent=23 // pred_check
          %p179 = pneg %p76
        $region38: #{tpu_custom_call.1} parent=23 // pred_check_branch
          %181 = sbr.rel (%p179) target = $region40
        $region39: #{tpu_custom_call.1} parent=23 // pred_region
          %s183 = ssub.s32 16, 16
          %184 = vsyncadd %s176, %s183
          %s185 = smul.addr %s22, 16
          %s186 = scalar_lea.hbm %s1, %s185
          %s188 = sshll.u32 %s178, 4
          %s189 = int_to_ptr.vmem [resolvable:$true] %s188
          %191 = dma.vmem_to_hbm [thread:$0]  %s189, 16, %s186, %s176
        $region40: #{tpu_custom_call.1} parent=23 // pred_fallthru
          _
      $region24: #{tpu_custom_call.1} parent=5 // pred_fallthru
        _
      %p192 = scmp.le.s32.totalorder 2, %s13
      // Predicated region
      $region41: #{tpu_custom_call.1} parent=5 // pred_check
        %p193 = pneg %p192
      $region42: #{tpu_custom_call.1} parent=5 // pred_check_branch
        %195 = sbr.rel (%p193) target = $region44
      $region43: #{tpu_custom_call.1} parent=5 // pred_region
        %s196 = ssub.s32 %s13, 2
        // Predicated region
        $region45: #{tpu_custom_call.1} parent=43 // pred_check
          %p197 = pneg %p82
        $region46: #{tpu_custom_call.1} parent=43 // pred_check_branch
          %199 = sbr.rel (%p197) target = $region48
        $region47: #{tpu_custom_call.1} parent=43 // pred_region
          %s200 = sand.u32 %s67, 1
          %s201 = scalar_lea.sflag [#allocation5], %s200
          %s202 = sand.u32 %s67, 1
          %s203 = scalar_lea.vmem [#allocation6], %s202
          %204 = dma.done %s201, 16
        $region48: #{tpu_custom_call.1} parent=43 // pred_fallthru
          _
      $region44: #{tpu_custom_call.1} parent=5 // pred_fallthru
        _
    $region6: #{tpu_custom_call.1} parent=1 // loop_footer
      %s17 = sadd.s32 1, %s13
    $region7: #{tpu_custom_call.1} parent=1 // loop_footer_branch
      %12 = sbr.rel target = $region3
    $region8: #{tpu_custom_call.1} parent=1 // loop_exit
      _
    %205 = vsyncpa [#allocation4], 1
    %s206 = scalar_lea.sflag [#allocation4], 1
    %207 = vsyncpa %s206, 1
    %208 = vsyncpa [#allocation5], 1
    %s209 = scalar_lea.sflag [#allocation5], 1
    %210 = vsyncpa %s209, 1

</llo_original>
